<compile_context>
chip_gen: v6e
topology: v6e:2x2x1
jax: 0.10.0
libtpu: 0.0.40
codegen_flags: <defaults>
</compile_context>

<pallas_src>
import jax
import jax.numpy as jnp
from jax.experimental import pallas as pl
from jax.experimental.pallas import tpu as pltpu

_LANE = 128
_SUBLANE = 8


def _round_up(v, m):
    return (v + m - 1) // m * m


def _pad_reorder_gates(w, H, Hp):
    """Split PyTorch-ordered [i|f|g|o] gate columns (last axis), zero-pad each
    gate's width from H to Hp, and reorder to [i|f|o|g] so the kernel applies a
    single sigmoid over the first 3*Hp columns and a single tanh over the last
    Hp columns, all on 128-lane-aligned views."""
    i, f, g, o = jnp.split(w, 4, axis=-1)
    pad = lambda a: jnp.pad(a, ((0, 0),) * (a.ndim - 1) + ((0, Hp - H),))
    return jnp.concatenate([pad(i), pad(f), pad(o), pad(g)], axis=-1)


def lstm_recurrence_kernel(xw_ref, whh_ref, h_out_ref, h_scr, c_scr):
    """One (batch-tile, time-chunk) grid step of the LSTM recurrence.

    xw_ref   : (tc, bt, 4Hp)  precomputed x@W_ih^T + b for this chunk (streamed)
    whh_ref  : (Hp, 4Hp)      W_hh^T, gate columns ordered [i, f, o, g]
    h_out_ref: (tc, bt, Hp)   hidden states for this chunk (streamed back)
    h_scr    : (bt, Hp) f32   hidden state carried across time chunks
    c_scr    : (bt, Hp) f32   cell  state carried across time chunks
    """
    tc = xw_ref.shape[0]
    Hp = h_out_ref.shape[-1]

    # First time chunk of a batch tile -> reset recurrent state.  The
    # time-chunk axis is the inner grid axis, so it restarts at 0 whenever the
    # batch-tile axis advances.
    @pl.when(pl.program_id(1) == 0)
    def _():
        h_scr[...] = jnp.zeros_like(h_scr)
        c_scr[...] = jnp.zeros_like(c_scr)

    w_hh = whh_ref[...]            # hoist the recurrent-weight load
    mm_dtype = w_hh.dtype          # f32, or bf16 on v6e/v7x for MXU headroom

    def step(t, carry):
        # gates = xW[t] + h_{t-1} @ W_hh^T                      -> (bt, 4Hp)
        gates = xw_ref[t] + jnp.dot(h_scr[...].astype(mm_dtype), w_hh,
                                    preferred_element_type=jnp.float32)
        # Column order [i, f, o, g]: one fused sigmoid (3Hp lanes) + one tanh.
        sig = jax.nn.sigmoid(gates[:, :3 * Hp])
        g = jnp.tanh(gates[:, 3 * Hp:])
        i = sig[:, 0 * Hp:1 * Hp]
        f = sig[:, 1 * Hp:2 * Hp]
        o = sig[:, 2 * Hp:3 * Hp]

        c_new = f * c_scr[...] + i * g          # all state math stays f32
        h_new = o * jnp.tanh(c_new)

        c_scr[...] = c_new                      # state in VMEM scratch, not a
        h_scr[...] = h_new                      # loop carry (no vreg spills)
        h_out_ref[t] = h_new                    # lane-aligned tile store
        return carry

    # NOTE: the recurrence keeps updating (h, c) past each sequence's x_len;
    # per-timestep outputs are masked afterwards (pad_packed semantics), and
    # the final (h_n, c_n) is never exposed by this module's forward.
    # tc is small & fixed -> full unroll; use unroll=2..8 for long chunks.
    jax.lax.fori_loop(0, tc, step, 0, unroll=True)


def vanilla_lstm_forward(x, x_len, params, *, time_chunk=4, batch_tile=8,
                         matmul_dtype=jnp.float32):
    """Forward of vanillaLSTM (mode='cont'): returns (B*T, n_class) log-probs.

    Matches the PyTorch module when max(x_len) == T (the padded length that
    pad_packed_sequence returns).  Padded timesteps emit log_softmax(b_out)
    rows, exactly like the reference flow (zero rows -> Linear -> log_softmax).
    """
    B, T, D = x.shape
    H = params["w_hh_T"].shape[0]

    # Layout: pad H to a 128-lane multiple, batch to the sublane-aligned batch
    # tile, time to the chunk size.  Zero padding keeps padded gate columns at
    # gates == 0, so padded hidden lanes stay exactly 0 through the recurrence.
    Hp = _round_up(H, _LANE)
    bt = max(_SUBLANE, _round_up(batch_tile, _SUBLANE))
    tc = max(1, int(time_chunk))
    Bp = _round_up(B, bt)
    Tp = _round_up(T, tc)
    num_b, num_c = Bp // bt, Tp // tc

    w_ih = _pad_reorder_gates(params["w_ih_T"], H, Hp)                 # (D, 4Hp)
    w_hh = _pad_reorder_gates(params["w_hh_T"], H, Hp)                 # (H, 4Hp)
    w_hh = jnp.pad(w_hh, ((0, Hp - H), (0, 0)))                        # (Hp, 4Hp)
    bias = _pad_reorder_gates(params["b_ih"] + params["b_hh"], H, Hp)  # (4Hp,)

    # Input projection OUTSIDE the kernel (review: "do the projection as a
    # separate matmul and stream xW chunks").  Trivially parallel, full MXU
    # rate in XLA; f32 accumulation even with bf16 inputs.
    x_t = jnp.transpose(x, (1, 0, 2)).astype(matmul_dtype)             # (T, B, D)
    xw = jnp.einsum("tbd,dg->tbg", x_t, w_ih.astype(matmul_dtype),
                    preferred_element_type=jnp.float32) + bias          # (T, B, 4Hp)
    xw = jnp.pad(xw, ((0, Tp - T), (0, Bp - B), (0, 0)))                # (Tp, Bp, 4Hp)

    w_hh = w_hh.astype(matmul_dtype)

    # VMEM budget: double-buffered xw / h_out chunks, resident W_hh, h/c
    # scratch, 2x headroom; capped below physical VMEM.
    mm_bytes = jnp.dtype(matmul_dtype).itemsize
    resident = (2 * tc * bt * 4 * Hp * 4          # xw chunk, double-buffered
                + 2 * tc * bt * Hp * 4            # h_out chunk, double-buffered
                + 2 * Hp * 4 * Hp * mm_bytes      # W_hh (+ pipeline copy)
                + 2 * bt * Hp * 4)                # h, c scratch
    try:
        vmem_cap = pltpu.get_tpu_info().vmem_capacity_bytes
    except Exception:
        vmem_cap = 64 * 1024 * 1024               # conservative (v7x per-TC)
    vmem_limit = int(min(max(2 * resident, 32 * 1024 * 1024),
                         int(0.9 * vmem_cap)))

    h_out = pl.pallas_call(
        lstm_recurrence_kernel,
        out_shape=jax.ShapeDtypeStruct((Tp, Bp, Hp), jnp.float32),
        grid_spec=pltpu.PrefetchScalarGridSpec(
            num_scalar_prefetch=0,
            # Batch tiles are independent -> "parallel" (shards across the two
            # TensorCores on v7x); time chunks carry (h, c) -> "arbitrary".
            grid=(num_b, num_c),
            in_specs=[
                pl.BlockSpec((tc, bt, 4 * Hp), lambda b, c: (c, b, 0)),  # xW
                pl.BlockSpec((Hp, 4 * Hp), lambda b, c: (0, 0)),         # W_hh^T
            ],
            out_specs=pl.BlockSpec((tc, bt, Hp), lambda b, c: (c, b, 0)),
            scratch_shapes=[
                pltpu.VMEM((bt, Hp), jnp.float32),   # h carry
                pltpu.VMEM((bt, Hp), jnp.float32),   # c carry
            ],
        ),
        compiler_params=pltpu.CompilerParams(
            dimension_semantics=("parallel", "arbitrary"),
            vmem_limit_bytes=vmem_limit,
        ),
    )(xw, w_hh)

    # Unpad, pack/pad_packed masking, Linear head, log_softmax: trivially
    # parallel, applied in XLA (per the review).
    hs = jnp.transpose(h_out[:T, :B, :H], (1, 0, 2))             # (B, T, H)
    mask = (jnp.arange(T)[None, :] < x_len[:, None]).astype(hs.dtype)
    hs = hs * mask[:, :, None]
    logits = hs.reshape(B * T, H) @ params["w_out_T"] + params["b_out"]
    return jax.nn.log_softmax(logits, axis=1)


def ref_forward(x, x_len, params):
    """Pure-JAX reference of the same forward (for correctness check)."""
    B, T, D = x.shape
    H = params["w_hh_T"].shape[0]
    bias = params["b_ih"] + params["b_hh"]

    def step(carry, x_t):
        h, c = carry
        gates = x_t @ params["w_ih_T"] + h @ params["w_hh_T"] + bias
        i = jax.nn.sigmoid(gates[:, 0 * H:1 * H])
        f = jax.nn.sigmoid(gates[:, 1 * H:2 * H])
        g = jnp.tanh(gates[:, 2 * H:3 * H])
        o = jax.nn.sigmoid(gates[:, 3 * H:4 * H])
        c = f * c + i * g
        h = o * jnp.tanh(c)
        return (h, c), h

    h0 = jnp.zeros((B, H), jnp.float32)
    c0 = jnp.zeros((B, H), jnp.float32)
    _, hs = jax.lax.scan(step, (h0, c0), jnp.transpose(x, (1, 0, 2)))
    hs = jnp.transpose(hs, (1, 0, 2))                            # (B, T, H)
    mask = (jnp.arange(T)[None, :] < x_len[:, None]).astype(jnp.float32)
    hs = hs * mask[:, :, None]
    logits = hs.reshape(B * T, H) @ params["w_out_T"] + params["b_out"]
    return jax.nn.log_softmax(logits, axis=1)


def init_params(key, input_dim, hidden_dim, n_class):
    """Deterministic init with nn.LSTM / nn.Linear shapes (stored transposed,
    PyTorch gate order [i, f, g, o] in the columns)."""
    ks = jax.random.split(key, 6)
    k = 1.0 / jnp.sqrt(hidden_dim)
    u = lambda kk, shape: jax.random.uniform(kk, shape, jnp.float32, -k, k)
    return {
        "w_ih_T": u(ks[0], (input_dim, 4 * hidden_dim)),   # (D, 4H) == W_ih^T
        "w_hh_T": u(ks[1], (hidden_dim, 4 * hidden_dim)),  # (H, 4H) == W_hh^T
        "b_ih":   u(ks[2], (4 * hidden_dim,)),
        "b_hh":   u(ks[3], (4 * hidden_dim,)),
        "w_out_T": u(ks[4], (hidden_dim, n_class)),        # (H, C) == W_linear^T
        "b_out":  u(ks[5], (n_class,)),
    }


if __name__ == "__main__":
    B, T, D, H, C = 2, 8, 16, 32, 2           # small shapes consistent with the module
    key = jax.random.PRNGKey(0)
    kp, kx = jax.random.split(key)
    params = init_params(kp, D, H, C)

    x = jax.random.normal(kx, (B, T, D), jnp.float32)
    x_len = jnp.array([8, 5], jnp.int32)      # max(x_len) == T (pad_packed output length)

    out = jax.jit(vanilla_lstm_forward)(x, x_len, params)
    out = jax.block_until_ready(out)

    ref = ref_forward(x, x_len, params)
    assert out.shape == (B * T, C)
    max_diff = float(jnp.max(jnp.abs(out - ref)))
    assert jnp.allclose(out, ref, rtol=1e-4, atol=1e-5), f"max abs diff {max_diff}"

    print("KERNEL_OK")
</pallas_src>

<mosaic_0001>
module attributes {stable_mosaic.version = 11 : i64} {
  func.func @lstm_recurrence_kernel(%arg0: i32, %arg1: i32, %arg2: memref<4x8x512xf32, #tpu.memory_space<vmem>>, %arg3: memref<128x512xf32, #tpu.memory_space<vmem>>, %arg4: memref<4x8x128xf32, #tpu.memory_space<vmem>>, %arg5: memref<8x128xf32, #tpu.memory_space<vmem>>, %arg6: memref<8x128xf32, #tpu.memory_space<vmem>>) attributes {dimension_semantics = [#tpu.dimension_semantics<parallel>, #tpu.dimension_semantics<arbitrary>], iteration_bounds = array<i64: 1, 2>, scalar_prefetch = 0 : i64, scratch_operands = 2 : i64, tpu.core_type = #tpu.core_type<tc>, window_params = [{transform_indices = @transform_0, window_bounds = array<i64: 4, 8, 512>}, {pipeline_mode = #tpu.pipeline_mode<synchronous>, transform_indices = @transform_1, window_bounds = array<i64: 128, 512>}, {transform_indices = @transform_2, window_bounds = array<i64: 4, 8, 128>}]} {
    %c0_i32 = arith.constant 0 : i32
    %0 = arith.cmpi eq, %arg1, %c0_i32 : i32
    %1 = arith.extui %0 : i1 to i32
    %c0_i32_0 = arith.constant 0 : i32
    %2 = arith.cmpi ne, %1, %c0_i32_0 : i32
    scf.if %2 {
      %cst_58 = arith.constant 0.000000e+00 : f32
      %120 = vector.broadcast %cst_58 : f32 to vector<8x128xf32>
      %c0_59 = arith.constant 0 : index
      %c0_60 = arith.constant 0 : index
      %121 = vector.load %arg5[%c0_59, %c0_60] : memref<8x128xf32, #tpu.memory_space<vmem>>, vector<8x128xf32>
      tpu.vector_store %arg5[%c0_59, %c0_60], %120 {strides = array<i32>} : memref<8x128xf32, #tpu.memory_space<vmem>>, vector<8x128xf32>,
      %cst_61 = arith.constant 0.000000e+00 : f32
      %122 = vector.broadcast %cst_61 : f32 to vector<8x128xf32>
      %c0_62 = arith.constant 0 : index
      %c0_63 = arith.constant 0 : index
      %123 = vector.load %arg6[%c0_62, %c0_63] : memref<8x128xf32, #tpu.memory_space<vmem>>, vector<8x128xf32>
      tpu.vector_store %arg6[%c0_62, %c0_63], %122 {strides = array<i32>} : memref<8x128xf32, #tpu.memory_space<vmem>>, vector<8x128xf32>,
    } else {
    }
    %c0 = arith.constant 0 : index
    %c0_1 = arith.constant 0 : index
    %3 = vector.load %arg3[%c0, %c0_1] : memref<128x512xf32, #tpu.memory_space<vmem>>, vector<128x512xf32>
    %c0_i32_2 = arith.constant 0 : i32
    %4 = arith.index_cast %c0_i32_2 : i32 to index
    %c0_3 = arith.constant 0 : index
    %c0_4 = arith.constant 0 : index
    %5 = vector.load %arg2[%4, %c0_3, %c0_4] : memref<4x8x512xf32, #tpu.memory_space<vmem>>, vector<1x8x512xf32>
    %6 = vector.shape_cast %5 : vector<1x8x512xf32> to vector<8x512xf32>
    %c0_5 = arith.constant 0 : index
    %c0_6 = arith.constant 0 : index
    %7 = vector.load %arg5[%c0_5, %c0_6] : memref<8x128xf32, #tpu.memory_space<vmem>>, vector<8x128xf32>
    %cst = arith.constant dense<0.000000e+00> : vector<8x512xf32>
    %8 = tpu.matmul %7, %3, %cst {dimension_numbers = #tpu.dot_dimension_numbers<[1], [0], [0], [1], [0, 0, 1, 1], [], []>} : vector<8x128xf32>, vector<128x512xf32>, vector<8x512xf32> -> vector<8x512xf32>
    %9 = arith.addf %6, %8 : vector<8x512xf32>
    %10 = vector.extract_strided_slice %9 {offsets = [0, 0], sizes = [8, 384], strides = [1, 1]} : vector<8x512xf32> to vector<8x384xf32>
    %11 = arith.negf %10 : vector<8x384xf32>
    %12 = math.exp %11 : vector<8x384xf32>
    %cst_7 = arith.constant 1.000000e+00 : f32
    %13 = vector.broadcast %cst_7 : f32 to vector<8x384xf32>
    %14 = arith.addf %13, %12 : vector<8x384xf32>
    %15 = arith.divf %13, %14 : vector<8x384xf32>
    %16 = vector.extract_strided_slice %9 {offsets = [0, 384], sizes = [8, 128], strides = [1, 1]} : vector<8x512xf32> to vector<8x128xf32>
    %17 = math.tanh %16 : vector<8x128xf32>
    %18 = vector.extract_strided_slice %15 {offsets = [0, 0], sizes = [8, 128], strides = [1, 1]} : vector<8x384xf32> to vector<8x128xf32>
    %19 = vector.extract_strided_slice %15 {offsets = [0, 128], sizes = [8, 128], strides = [1, 1]} : vector<8x384xf32> to vector<8x128xf32>
    %20 = vector.extract_strided_slice %15 {offsets = [0, 256], sizes = [8, 128], strides = [1, 1]} : vector<8x384xf32> to vector<8x128xf32>
    %c0_8 = arith.constant 0 : index
    %c0_9 = arith.constant 0 : index
    %21 = vector.load %arg6[%c0_8, %c0_9] : memref<8x128xf32, #tpu.memory_space<vmem>>, vector<8x128xf32>
    %22 = arith.mulf %19, %21 : vector<8x128xf32>
    %23 = arith.mulf %18, %17 : vector<8x128xf32>
    %24 = arith.addf %22, %23 : vector<8x128xf32>
    %25 = math.tanh %24 : vector<8x128xf32>
    %26 = arith.mulf %20, %25 : vector<8x128xf32>
    %c0_10 = arith.constant 0 : index
    %c0_11 = arith.constant 0 : index
    %27 = vector.load %arg6[%c0_10, %c0_11] : memref<8x128xf32, #tpu.memory_space<vmem>>, vector<8x128xf32>
    tpu.vector_store %arg6[%c0_10, %c0_11], %24 {strides = array<i32>} : memref<8x128xf32, #tpu.memory_space<vmem>>, vector<8x128xf32>,
    %c0_12 = arith.constant 0 : index
    %c0_13 = arith.constant 0 : index
    %28 = vector.load %arg5[%c0_12, %c0_13] : memref<8x128xf32, #tpu.memory_space<vmem>>, vector<8x128xf32>
    tpu.vector_store %arg5[%c0_12, %c0_13], %26 {strides = array<i32>} : memref<8x128xf32, #tpu.memory_space<vmem>>, vector<8x128xf32>,
    %29 = arith.index_cast %c0_i32_2 : i32 to index
    %c0_14 = arith.constant 0 : index
    %c0_15 = arith.constant 0 : index
    %30 = vector.load %arg4[%29, %c0_14, %c0_15] : memref<4x8x128xf32, #tpu.memory_space<vmem>>, vector<1x8x128xf32>
    %31 = vector.shape_cast %30 : vector<1x8x128xf32> to vector<8x128xf32>
    %32 = vector.shape_cast %26 : vector<8x128xf32> to vector<1x8x128xf32>
    tpu.vector_store %arg4[%29, %c0_14, %c0_15], %32 {strides = array<i32>} : memref<4x8x128xf32, #tpu.memory_space<vmem>>, vector<1x8x128xf32>,
    %c1_i32 = arith.constant 1 : i32
    %33 = arith.index_cast %c1_i32 : i32 to index
    %c0_16 = arith.constant 0 : index
    %c0_17 = arith.constant 0 : index
    %34 = vector.load %arg2[%33, %c0_16, %c0_17] : memref<4x8x512xf32, #tpu.memory_space<vmem>>, vector<1x8x512xf32>
    %35 = vector.shape_cast %34 : vector<1x8x512xf32> to vector<8x512xf32>
    %c0_18 = arith.constant 0 : index
    %c0_19 = arith.constant 0 : index
    %36 = vector.load %arg5[%c0_18, %c0_19] : memref<8x128xf32, #tpu.memory_space<vmem>>, vector<8x128xf32>
    %cst_20 = arith.constant dense<0.000000e+00> : vector<8x512xf32>
    %37 = tpu.matmul %36, %3, %cst_20 {dimension_numbers = #tpu.dot_dimension_numbers<[1], [0], [0], [1], [0, 0, 1, 1], [], []>} : vector<8x128xf32>, vector<128x512xf32>, vector<8x512xf32> -> vector<8x512xf32>
    %38 = arith.addf %35, %37 : vector<8x512xf32>
    %39 = vector.extract_strided_slice %38 {offsets = [0, 0], sizes = [8, 384], strides = [1, 1]} : vector<8x512xf32> to vector<8x384xf32>
    %40 = arith.negf %39 : vector<8x384xf32>
    %41 = math.exp %40 : vector<8x384xf32>
    %cst_21 = arith.constant 1.000000e+00 : f32
    %42 = vector.broadcast %cst_21 : f32 to vector<8x384xf32>
    %43 = arith.addf %42, %41 : vector<8x384xf32>
    %44 = arith.divf %42, %43 : vector<8x384xf32>
    %45 = vector.extract_strided_slice %38 {offsets = [0, 384], sizes = [8, 128], strides = [1, 1]} : vector<8x512xf32> to vector<8x128xf32>
    %46 = math.tanh %45 : vector<8x128xf32>
    %47 = vector.extract_strided_slice %44 {offsets = [0, 0], sizes = [8, 128], strides = [1, 1]} : vector<8x384xf32> to vector<8x128xf32>
    %48 = vector.extract_strided_slice %44 {offsets = [0, 128], sizes = [8, 128], strides = [1, 1]} : vector<8x384xf32> to vector<8x128xf32>
    %49 = vector.extract_strided_slice %44 {offsets = [0, 256], sizes = [8, 128], strides = [1, 1]} : vector<8x384xf32> to vector<8x128xf32>
    %c0_22 = arith.constant 0 : index
    %c0_23 = arith.constant 0 : index
    %50 = vector.load %arg6[%c0_22, %c0_23] : memref<8x128xf32, #tpu.memory_space<vmem>>, vector<8x128xf32>
    %51 = arith.mulf %48, %50 : vector<8x128xf32>
    %52 = arith.mulf %47, %46 : vector<8x128xf32>
    %53 = arith.addf %51, %52 : vector<8x128xf32>
    %54 = math.tanh %53 : vector<8x128xf32>
    %55 = arith.mulf %49, %54 : vector<8x128xf32>
    %c0_24 = arith.constant 0 : index
    %c0_25 = arith.constant 0 : index
    %56 = vector.load %arg6[%c0_24, %c0_25] : memref<8x128xf32, #tpu.memory_space<vmem>>, vector<8x128xf32>
    tpu.vector_store %arg6[%c0_24, %c0_25], %53 {strides = array<i32>} : memref<8x128xf32, #tpu.memory_space<vmem>>, vector<8x128xf32>,
    %c0_26 = arith.constant 0 : index
    %c0_27 = arith.constant 0 : index
    %57 = vector.load %arg5[%c0_26, %c0_27] : memref<8x128xf32, #tpu.memory_space<vmem>>, vector<8x128xf32>
    tpu.vector_store %arg5[%c0_26, %c0_27], %55 {strides = array<i32>} : memref<8x128xf32, #tpu.memory_space<vmem>>, vector<8x128xf32>,
    %58 = arith.index_cast %c1_i32 : i32 to index
    %c0_28 = arith.constant 0 : index
    %c0_29 = arith.constant 0 : index
    %59 = vector.load %arg4[%58, %c0_28, %c0_29] : memref<4x8x128xf32, #tpu.memory_space<vmem>>, vector<1x8x128xf32>
    %60 = vector.shape_cast %59 : vector<1x8x128xf32> to vector<8x128xf32>
    %61 = vector.shape_cast %55 : vector<8x128xf32> to vector<1x8x128xf32>
    tpu.vector_store %arg4[%58, %c0_28, %c0_29], %61 {strides = array<i32>} : memref<4x8x128xf32, #tpu.memory_space<vmem>>, vector<1x8x128xf32>,
    %c2_i32 = arith.constant 2 : i32
    %62 = arith.index_cast %c2_i32 : i32 to index
    %c0_30 = arith.constant 0 : index
    %c0_31 = arith.constant 0 : index
    %63 = vector.load %arg2[%62, %c0_30, %c0_31] : memref<4x8x512xf32, #tpu.memory_space<vmem>>, vector<1x8x512xf32>
    %64 = vector.shape_cast %63 : vector<1x8x512xf32> to vector<8x512xf32>
    %c0_32 = arith.constant 0 : index
    %c0_33 = arith.constant 0 : index
    %65 = vector.load %arg5[%c0_32, %c0_33] : memref<8x128xf32, #tpu.memory_space<vmem>>, vector<8x128xf32>
    %cst_34 = arith.constant dense<0.000000e+00> : vector<8x512xf32>
    %66 = tpu.matmul %65, %3, %cst_34 {dimension_numbers = #tpu.dot_dimension_numbers<[1], [0], [0], [1], [0, 0, 1, 1], [], []>} : vector<8x128xf32>, vector<128x512xf32>, vector<8x512xf32> -> vector<8x512xf32>
    %67 = arith.addf %64, %66 : vector<8x512xf32>
    %68 = vector.extract_strided_slice %67 {offsets = [0, 0], sizes = [8, 384], strides = [1, 1]} : vector<8x512xf32> to vector<8x384xf32>
    %69 = arith.negf %68 : vector<8x384xf32>
    %70 = math.exp %69 : vector<8x384xf32>
    %cst_35 = arith.constant 1.000000e+00 : f32
    %71 = vector.broadcast %cst_35 : f32 to vector<8x384xf32>
    %72 = arith.addf %71, %70 : vector<8x384xf32>
    %73 = arith.divf %71, %72 : vector<8x384xf32>
    %74 = vector.extract_strided_slice %67 {offsets = [0, 384], sizes = [8, 128], strides = [1, 1]} : vector<8x512xf32> to vector<8x128xf32>
    %75 = math.tanh %74 : vector<8x128xf32>
    %76 = vector.extract_strided_slice %73 {offsets = [0, 0], sizes = [8, 128], strides = [1, 1]} : vector<8x384xf32> to vector<8x128xf32>
    %77 = vector.extract_strided_slice %73 {offsets = [0, 128], sizes = [8, 128], strides = [1, 1]} : vector<8x384xf32> to vector<8x128xf32>
    %78 = vector.extract_strided_slice %73 {offsets = [0, 256], sizes = [8, 128], strides = [1, 1]} : vector<8x384xf32> to vector<8x128xf32>
    %c0_36 = arith.constant 0 : index
    %c0_37 = arith.constant 0 : index
    %79 = vector.load %arg6[%c0_36, %c0_37] : memref<8x128xf32, #tpu.memory_space<vmem>>, vector<8x128xf32>
    %80 = arith.mulf %77, %79 : vector<8x128xf32>
    %81 = arith.mulf %76, %75 : vector<8x128xf32>
    %82 = arith.addf %80, %81 : vector<8x128xf32>
    %83 = math.tanh %82 : vector<8x128xf32>
    %84 = arith.mulf %78, %83 : vector<8x128xf32>
    %c0_38 = arith.constant 0 : index
    %c0_39 = arith.constant 0 : index
    %85 = vector.load %arg6[%c0_38, %c0_39] : memref<8x128xf32, #tpu.memory_space<vmem>>, vector<8x128xf32>
    tpu.vector_store %arg6[%c0_38, %c0_39], %82 {strides = array<i32>} : memref<8x128xf32, #tpu.memory_space<vmem>>, vector<8x128xf32>,
    %c0_40 = arith.constant 0 : index
    %c0_41 = arith.constant 0 : index
    %86 = vector.load %arg5[%c0_40, %c0_41] : memref<8x128xf32, #tpu.memory_space<vmem>>, vector<8x128xf32>
    tpu.vector_store %arg5[%c0_40, %c0_41], %84 {strides = array<i32>} : memref<8x128xf32, #tpu.memory_space<vmem>>, vector<8x128xf32>,
    %87 = arith.index_cast %c2_i32 : i32 to index
    %c0_42 = arith.constant 0 : index
    %c0_43 = arith.constant 0 : index
    %88 = vector.load %arg4[%87, %c0_42, %c0_43] : memref<4x8x128xf32, #tpu.memory_space<vmem>>, vector<1x8x128xf32>
    %89 = vector.shape_cast %88 : vector<1x8x128xf32> to vector<8x128xf32>
    %90 = vector.shape_cast %84 : vector<8x128xf32> to vector<1x8x128xf32>
    tpu.vector_store %arg4[%87, %c0_42, %c0_43], %90 {strides = array<i32>} : memref<4x8x128xf32, #tpu.memory_space<vmem>>, vector<1x8x128xf32>,
    %c3_i32 = arith.constant 3 : i32
    %91 = arith.index_cast %c3_i32 : i32 to index
    %c0_44 = arith.constant 0 : index
    %c0_45 = arith.constant 0 : index
    %92 = vector.load %arg2[%91, %c0_44, %c0_45] : memref<4x8x512xf32, #tpu.memory_space<vmem>>, vector<1x8x512xf32>
    %93 = vector.shape_cast %92 : vector<1x8x512xf32> to vector<8x512xf32>
    %c0_46 = arith.constant 0 : index
    %c0_47 = arith.constant 0 : index
    %94 = vector.load %arg5[%c0_46, %c0_47] : memref<8x128xf32, #tpu.memory_space<vmem>>, vector<8x128xf32>
    %cst_48 = arith.constant dense<0.000000e+00> : vector<8x512xf32>
    %95 = tpu.matmul %94, %3, %cst_48 {dimension_numbers = #tpu.dot_dimension_numbers<[1], [0], [0], [1], [0, 0, 1, 1], [], []>} : vector<8x128xf32>, vector<128x512xf32>, vector<8x512xf32> -> vector<8x512xf32>
    %96 = arith.addf %93, %95 : vector<8x512xf32>
    %97 = vector.extract_strided_slice %96 {offsets = [0, 0], sizes = [8, 384], strides = [1, 1]} : vector<8x512xf32> to vector<8x384xf32>
    %98 = arith.negf %97 : vector<8x384xf32>
    %99 = math.exp %98 : vector<8x384xf32>
    %cst_49 = arith.constant 1.000000e+00 : f32
    %100 = vector.broadcast %cst_49 : f32 to vector<8x384xf32>
    %101 = arith.addf %100, %99 : vector<8x384xf32>
    %102 = arith.divf %100, %101 : vector<8x384xf32>
    %103 = vector.extract_strided_slice %96 {offsets = [0, 384], sizes = [8, 128], strides = [1, 1]} : vector<8x512xf32> to vector<8x128xf32>
    %104 = math.tanh %103 : vector<8x128xf32>
    %105 = vector.extract_strided_slice %102 {offsets = [0, 0], sizes = [8, 128], strides = [1, 1]} : vector<8x384xf32> to vector<8x128xf32>
    %106 = vector.extract_strided_slice %102 {offsets = [0, 128], sizes = [8, 128], strides = [1, 1]} : vector<8x384xf32> to vector<8x128xf32>
    %107 = vector.extract_strided_slice %102 {offsets = [0, 256], sizes = [8, 128], strides = [1, 1]} : vector<8x384xf32> to vector<8x128xf32>
    %c0_50 = arith.constant 0 : index
    %c0_51 = arith.constant 0 : index
    %108 = vector.load %arg6[%c0_50, %c0_51] : memref<8x128xf32, #tpu.memory_space<vmem>>, vector<8x128xf32>
    %109 = arith.mulf %106, %108 : vector<8x128xf32>
    %110 = arith.mulf %105, %104 : vector<8x128xf32>
    %111 = arith.addf %109, %110 : vector<8x128xf32>
    %112 = math.tanh %111 : vector<8x128xf32>
    %113 = arith.mulf %107, %112 : vector<8x128xf32>
    %c0_52 = arith.constant 0 : index
    %c0_53 = arith.constant 0 : index
    %114 = vector.load %arg6[%c0_52, %c0_53] : memref<8x128xf32, #tpu.memory_space<vmem>>, vector<8x128xf32>
    tpu.vector_store %arg6[%c0_52, %c0_53], %111 {strides = array<i32>} : memref<8x128xf32, #tpu.memory_space<vmem>>, vector<8x128xf32>,
    %c0_54 = arith.constant 0 : index
    %c0_55 = arith.constant 0 : index
    %115 = vector.load %arg5[%c0_54, %c0_55] : memref<8x128xf32, #tpu.memory_space<vmem>>, vector<8x128xf32>
    tpu.vector_store %arg5[%c0_54, %c0_55], %113 {strides = array<i32>} : memref<8x128xf32, #tpu.memory_space<vmem>>, vector<8x128xf32>,
    %116 = arith.index_cast %c3_i32 : i32 to index
    %c0_56 = arith.constant 0 : index
    %c0_57 = arith.constant 0 : index
    %117 = vector.load %arg4[%116, %c0_56, %c0_57] : memref<4x8x128xf32, #tpu.memory_space<vmem>>, vector<1x8x128xf32>
    %118 = vector.shape_cast %117 : vector<1x8x128xf32> to vector<8x128xf32>
    %119 = vector.shape_cast %113 : vector<8x128xf32> to vector<1x8x128xf32>
    tpu.vector_store %arg4[%116, %c0_56, %c0_57], %119 {strides = array<i32>} : memref<4x8x128xf32, #tpu.memory_space<vmem>>, vector<1x8x128xf32>,
    %c4_i32 = arith.constant 4 : i32
    return
  }
  func.func @transform_0(%arg0: i32, %arg1: i32) -> (i32, i32, i32) {
    %c0_i32 = arith.constant 0 : i32
    %c0_i32_0 = arith.constant 0 : i32
    return %arg1, %arg0, %c0_i32 : i32, i32, i32
  }
  func.func @transform_1(%arg0: i32, %arg1: i32) -> (i32, i32) {
    %c0_i32 = arith.constant 0 : i32
    %c0_i32_0 = arith.constant 0 : i32
    %c0_i32_1 = arith.constant 0 : i32
    return %c0_i32, %c0_i32_0 : i32, i32
  }
  func.func @transform_2(%arg0: i32, %arg1: i32) -> (i32, i32, i32) {
    %c0_i32 = arith.constant 0 : i32
    %c0_i32_0 = arith.constant 0 : i32
    return %arg1, %arg0, %c0_i32 : i32, i32, i32
  }
}

</mosaic_0001>

<llo_original>
// kernel: vanilla_lstm_forward.1
$region0: #{vanilla_lstm_forward.1}
  #allocation0 [shape = 'u32[]', space=smem, size = 0x4, offset = 0x4, fixed_abs, tag = 'smem constant byte address 0x4 - core index']
  #allocation1 [shape = 'u32[144,128]{1,0:T(1,128)}', space=vmem, size = 0x12000, scoped, tag = 'internal scratch']
  #allocation2 [shape = 'f32[8,128]{1,0:T(8,128)}', space=vmem, size = 0x1000, scoped, tag = 'scratch operand']
  #allocation3 [shape = 'f32[8,128]{1,0:T(8,128)}', space=vmem, size = 0x1000, scoped, tag = 'scratch operand']
  %s0 = inlined_call_operand.vmem [shape: f32[8,8,512], index: 0, kind: input, shape index: {}]
  %s1 = inlined_call_operand.vmem [shape: f32[128,512], index: 1, kind: input, shape index: {}]
  %s2 = inlined_call_operand.vmem [shape: f32[8,8,128], index: 2, kind: output, shape index: {}]
  %s3 = sld [smem:[#allocation0]]
  $region45: #{vanilla_lstm_forward.1} parent=0
    _
  %s5 = ssub.s32 1, %s3
  %s6 = scalar_select 0, %s5, %s3
  loop: start=0, step=1, limit=4
  $region2: #{vanilla_lstm_forward.1} parent=0 // loop_pre_header
    _
  $region3: #{vanilla_lstm_forward.1} parent=0 // loop_header
    %s8 = sphi 0, %s12
    %p9 = scmp.ge.s32.totalorder %s8, 4
    %s15 = sphi 0, %s27
    %s16 = sphi 0, %s23
    %s17 = sphi 0, %s15
    %s18 = sphi 0, %s16
    %s19 = sphi 0, %s17
    %s20 = sphi 0, %s18
    %s32 = sphi 0, %s34
    %s35 = sphi 0, %s32
    %s36 = sphi 0, %s35
    %s52 = sphi 0, %s36
    %s56 = sphi 0, %s56
    %s58 = sphi 0, %s56
    %s59 = sphi 0, %s58
    %s73 = sphi 0, %s59
    %s81 = sphi 0, %s83
    %s84 = sphi 0, %s81
    %s85 = sphi 0, %s84
    %s101 = sphi 0, %s85
  $region4: #{vanilla_lstm_forward.1} parent=0 // loop_header_branch
    %11 = sbr.rel (%p9) target = $region8
  $region5: #{vanilla_lstm_forward.1} parent=0 // loop_body
    %s13 = ssub.s32 %s8, 1
    %s14 = ssub.s32 %s8, 2
    %s21 = sadd.s32 1, %s16
    %p22 = scmp.ge.s32.totalorder %s21, 2
    %s23 = scalar_select %p22, 0, %s21
    %s24 = sadd.s32 1, %s15
    %s25 = scalar_select %p22, %s24, %s15
    %p26 = scmp.ge.s32.totalorder %s25, 1
    %s27 = scalar_select %p26, 0, %s25
    %s28 = ssub.s32 %s16, %s23
    %s29 = ssub.s32 %s15, %s27
    %s30 = sor.u32 %s28, %s29
    %p31 = scmp.eq.s32.totalorder %s30, 0
    %s33 = sadd.s32 %s32, 1
    %s34 = scalar_select %p31, %s32, %s33
    %p37 = pneg %p31
    %p38 = scmp.eq.s32.totalorder %s8, 1
    %p39 = por %p37, %p38
    %p40 = scmp.ne.s32.totalorder %s32, %s35
    %p41 = scmp.eq.s32.totalorder %s8, 0
    %p42 = por %p40, %p41
    %p43 = scmp.ne.s32.totalorder %s32, %s35
    %p44 = scmp.eq.s32.totalorder %s13, 1
    %p45 = por %p43, %p44
    %p46 = scmp.ne.s32.totalorder %s35, %s36
    %p47 = scmp.eq.s32.totalorder %s13, 0
    %p48 = por %p46, %p47
    %p49 = scmp.ne.s32.totalorder %s35, %s36
    %p50 = scmp.eq.s32.totalorder %s14, 1
    %p51 = por %p49, %p50
    %p53 = scmp.ne.s32.totalorder %s36, %s52
    %p54 = scmp.eq.s32.totalorder %s14, 0
    %p55 = por %p53, %p54
    %s57 = sadd.s32 %s56, 1
    %p60 = scmp.eq.s32.totalorder %s8, 1
    %p61 = scmp.ne.s32.totalorder %s56, %s58
    %p62 = scmp.eq.s32.totalorder %s8, 0
    %p63 = por %p61, %p62
    %p64 = scmp.ne.s32.totalorder %s56, %s58
    %p65 = scmp.eq.s32.totalorder %s13, 1
    %p66 = por %p64, %p65
    %p67 = scmp.ne.s32.totalorder %s58, %s59
    %p68 = scmp.eq.s32.totalorder %s13, 0
    %p69 = por %p67, %p68
    %p70 = scmp.ne.s32.totalorder %s58, %s59
    %p71 = scmp.eq.s32.totalorder %s14, 1
    %p72 = por %p70, %p71
    %p74 = scmp.ne.s32.totalorder %s59, %s73
    %p75 = scmp.eq.s32.totalorder %s14, 0
    %p76 = por %p74, %p75
    %s77 = ssub.s32 %s16, %s23
    %s78 = ssub.s32 %s15, %s27
    %s79 = sor.u32 %s77, %s78
    %p80 = scmp.eq.s32.totalorder %s79, 0
    %s82 = sadd.s32 %s81, 1
    %s83 = scalar_select %p80, %s81, %s82
    %p86 = pneg %p80
    %p87 = scmp.eq.s32.totalorder %s8, 1
    %p88 = por %p86, %p87
    %p89 = scmp.ne.s32.totalorder %s81, %s84
    %p90 = scmp.eq.s32.totalorder %s8, 0
    %p91 = por %p89, %p90
    %p92 = scmp.ne.s32.totalorder %s81, %s84
    %p93 = scmp.eq.s32.totalorder %s13, 1
    %p94 = por %p92, %p93
    %p95 = scmp.ne.s32.totalorder %s84, %s85
    %p96 = scmp.eq.s32.totalorder %s13, 0
    %p97 = por %p95, %p96
    %p98 = scmp.ne.s32.totalorder %s84, %s85
    %p99 = scmp.eq.s32.totalorder %s14, 1
    %p100 = por %p98, %p99
    %p102 = scmp.ne.s32.totalorder %s85, %s101
    %p103 = scmp.eq.s32.totalorder %s14, 0
    %p104 = por %p102, %p103
    %p105 = scmp.le.s32.totalorder 1, %s8
    %p106 = scmp.lt.s32.totalorder %s8, 3
    %p107 = pnand %p105, %p106
    %p108 = pneg %p107
    // Predicated region
    $region9: #{vanilla_lstm_forward.1} parent=5 // pred_check
      _
    $region10: #{vanilla_lstm_forward.1} parent=5 // pred_check_branch
      %110 = sbr.rel (%p107) target = $region12
    $region11: #{vanilla_lstm_forward.1} parent=5 // pred_region
      %s111 = ssub.s32 %s8, 1
      // Predicated region
      $region13: #{vanilla_lstm_forward.1} parent=11 // pred_check
        %p112 = pneg %p69
      $region14: #{vanilla_lstm_forward.1} parent=11 // pred_check_branch
        %114 = sbr.rel (%p112) target = $region16
      $region15: #{vanilla_lstm_forward.1} parent=11 // pred_region
        _
      $region16: #{vanilla_lstm_forward.1} parent=11 // pred_fallthru
        _
    $region12: #{vanilla_lstm_forward.1} parent=5 // pred_fallthru
      _
    %p115 = scmp.lt.s32.totalorder %s8, 2
    // Predicated region
    $region17: #{vanilla_lstm_forward.1} parent=5 // pred_check
      %p116 = pneg %p115
    $region18: #{vanilla_lstm_forward.1} parent=5 // pred_check_branch
      %118 = sbr.rel (%p116) target = $region20
    $region19: #{vanilla_lstm_forward.1} parent=5 // pred_region
      // Predicated region
      $region21: #{vanilla_lstm_forward.1} parent=19 // pred_check
        %p119 = pneg %p42
      $region22: #{vanilla_lstm_forward.1} parent=19 // pred_check_branch
        %121 = sbr.rel (%p119) target = $region24
      $region23: #{vanilla_lstm_forward.1} parent=19 // pred_region
        %s122 = smul.u32 4, %s16
        %p123 = scmp.lt.s32.totalorder %s122, 7
        %s124 = scalar_select %p123, %s122, 7
        %p125 = scmp.lt.s32.totalorder %s15, 0
        %s126 = scalar_select %p125, %s15, 0
        %s127 = smul.addr %s126, 4
        %s128 = smul.addr %s124, 4
        %s129 = sadd.s32 %s127, %s128
        %s130 = smul.addr %s129, 8
        %s131 = scalar_lea.vmem %s0, %s130
        %s132 = smul.u32 4, %s16
      $region24: #{vanilla_lstm_forward.1} parent=19 // pred_fallthru
        _
    $region20: #{vanilla_lstm_forward.1} parent=5 // pred_fallthru
      _
    %p133 = scmp.le.s32.totalorder 1, %s8
    %p134 = scmp.lt.s32.totalorder %s8, 3
    %p135 = pnand %p133, %p134
    %p136 = pneg %p135
    // Predicated region
    $region25: #{vanilla_lstm_forward.1} parent=5 // pred_check
      _
    $region26: #{vanilla_lstm_forward.1} parent=5 // pred_check_branch
      %138 = sbr.rel (%p135) target = $region28
    $region27: #{vanilla_lstm_forward.1} parent=5 // pred_region
      %s139 = ssub.s32 %s8, 1
      %s140 = smul.u32 4, %s18
      %p141 = scmp.lt.s32.totalorder %s140, 7
      %s142 = scalar_select %p141, %s140, 7
      %p143 = scmp.lt.s32.totalorder %s17, 0
      %s144 = scalar_select %p143, %s17, 0
      %s145 = smul.addr %s144, 4
      %s146 = smul.addr %s142, 4
      %s147 = sadd.s32 %s145, %s146
      %s148 = smul.addr %s147, 8
      %s149 = scalar_lea.vmem %s0, %s148
      %p150 = pneg %p48
      %p151 = pneg %p45
      %p152 = pneg %p69
      %p153 = pneg %p66
      %p154 = pneg %p97
      %p155 = pneg %p94
      %s156 = smul.u32 4, %s18
      %p157 = scmp.lt.s32.totalorder %s156, 7
      %s158 = scalar_select %p157, %s156, 7
      %p159 = scmp.lt.s32.totalorder %s17, 0
      %s160 = scalar_select %p159, %s17, 0
      %s161 = sadd.s32 %s160, %s158
      %s162 = smul.addr %s161, 8
      %s163 = scalar_lea.vmem %s2, %s162
      %s164 = smul.u32 4, %s18
      %p165 = scmp.lt.s32.totalorder %s164, 7
      %s166 = scalar_select %p165, %s164, 7
      %p167 = scmp.lt.s32.totalorder %s17, 0
      %s168 = scalar_select %p167, %s17, 0
      %s169 = smul.addr %s168, 4
      %s170 = smul.addr %s166, 4
      %s171 = sadd.s32 %s169, %s170
      %s172 = smul.addr %s171, 8
      %s173 = scalar_lea.vmem %s0, %s172
      %s174 = smul.u32 4, %s18
      %s175 = smul.u32 4, %s18
      %p176 = scmp.lt.s32.totalorder %s175, 7
      %s177 = scalar_select %p176, %s175, 7
      %p178 = scmp.lt.s32.totalorder %s17, 0
      %s179 = scalar_select %p178, %s17, 0
      %s180 = sadd.s32 %s179, %s177
      %s181 = smul.addr %s180, 8
      %s182 = scalar_lea.vmem %s2, %s181
      %s183 = smul.u32 4, %s18
      %p184 = scmp.eq.s32.totalorder %s18, 0
      // Predicated region
      $region29: #{vanilla_lstm_forward.1} parent=27 // pred_check
        %p185 = pneg %p184
      $region30: #{vanilla_lstm_forward.1} parent=27 // pred_check_branch
        %187 = sbr.rel (%p185) target = $region32
      $region31: #{vanilla_lstm_forward.1} parent=27 // pred_region
        %188 = vst [vmem:[#allocation2] sm:$0xff] 0.0
        %189 = vst [vmem:[#allocation3] sm:$0xff] 0.0
      $region32: #{vanilla_lstm_forward.1} parent=27 // pred_fallthru
        _
      %v190 = vld [vmem:[%s1] sm:$0xff]
      %v191 = vld [vmem:[%s1 + $0x8] sm:$0xff]
      %v192 = vld [vmem:[%s1 + $0x10] sm:$0xff]
      %v193 = vld [vmem:[%s1 + $0x18] sm:$0xff]
      %v194 = vld [vmem:[%s1 + $0x20] sm:$0xff]
      %v195 = vld [vmem:[%s1 + $0x28] sm:$0xff]
      %v196 = vld [vmem:[%s1 + $0x30] sm:$0xff]
      %v197 = vld [vmem:[%s1 + $0x38] sm:$0xff]
      %v198 = vld [vmem:[%s1 + $0x40] sm:$0xff]
      %v199 = vld [vmem:[%s1 + $0x48] sm:$0xff]
      %v200 = vld [vmem:[%s1 + $0x50] sm:$0xff]
      %v201 = vld [vmem:[%s1 + $0x58] sm:$0xff]
      %v202 = vld [vmem:[%s1 + $0x60] sm:$0xff]
      %v203 = vld [vmem:[%s1 + $0x68] sm:$0xff]
      %v204 = vld [vmem:[%s1 + $0x70] sm:$0xff]
      %v205 = vld [vmem:[%s1 + $0x78] sm:$0xff]
      %v206 = vld [vmem:[%s1 + $0x80] sm:$0xff]
      %v207 = vld [vmem:[%s1 + $0x88] sm:$0xff]
      %v208 = vld [vmem:[%s1 + $0x90] sm:$0xff]
      %v209 = vld [vmem:[%s1 + $0x98] sm:$0xff]
      %v210 = vld [vmem:[%s1 + $0xa0] sm:$0xff]
      %v211 = vld [vmem:[%s1 + $0xa8] sm:$0xff]
      %v212 = vld [vmem:[%s1 + $0xb0] sm:$0xff]
      %v213 = vld [vmem:[%s1 + $0xb8] sm:$0xff]
      %v214 = vld [vmem:[%s1 + $0xc0] sm:$0xff]
      %v215 = vld [vmem:[%s1 + $0xc8] sm:$0xff]
      %v216 = vld [vmem:[%s1 + $0xd0] sm:$0xff]
      %v217 = vld [vmem:[%s1 + $0xd8] sm:$0xff]
      %v218 = vld [vmem:[%s1 + $0xe0] sm:$0xff]
      %v219 = vld [vmem:[%s1 + $0xe8] sm:$0xff]
      %v220 = vld [vmem:[%s1 + $0xf0] sm:$0xff]
      %v221 = vld [vmem:[%s1 + $0xf8] sm:$0xff]
      %v222 = vld [vmem:[%s1 + $0x100] sm:$0xff]
      %v223 = vld [vmem:[%s1 + $0x108] sm:$0xff]
      %v224 = vld [vmem:[%s1 + $0x110] sm:$0xff]
      %v225 = vld [vmem:[%s1 + $0x118] sm:$0xff]
      %v226 = vld [vmem:[%s1 + $0x120] sm:$0xff]
      %v227 = vld [vmem:[%s1 + $0x128] sm:$0xff]
      %v228 = vld [vmem:[%s1 + $0x130] sm:$0xff]
      %v229 = vld [vmem:[%s1 + $0x138] sm:$0xff]
      %v230 = vld [vmem:[%s1 + $0x140] sm:$0xff]
      %v231 = vld [vmem:[%s1 + $0x148] sm:$0xff]
      %v232 = vld [vmem:[%s1 + $0x150] sm:$0xff]
      %v233 = vld [vmem:[%s1 + $0x158] sm:$0xff]
      %v234 = vld [vmem:[%s1 + $0x160] sm:$0xff]
      %v235 = vld [vmem:[%s1 + $0x168] sm:$0xff]
      %v236 = vld [vmem:[%s1 + $0x170] sm:$0xff]
      %v237 = vld [vmem:[%s1 + $0x178] sm:$0xff]
      %v238 = vld [vmem:[%s1 + $0x180] sm:$0xff]
      %v239 = vld [vmem:[%s1 + $0x188] sm:$0xff]
      %v240 = vld [vmem:[%s1 + $0x190] sm:$0xff]
      %v241 = vld [vmem:[%s1 + $0x198] sm:$0xff]
      %v242 = vld [vmem:[%s1 + $0x1a0] sm:$0xff]
      %v243 = vld [vmem:[%s1 + $0x1a8] sm:$0xff]
      %v244 = vld [vmem:[%s1 + $0x1b0] sm:$0xff]
      %v245 = vld [vmem:[%s1 + $0x1b8] sm:$0xff]
      %v246 = vld [vmem:[%s1 + $0x1c0] sm:$0xff]
      %v247 = vld [vmem:[%s1 + $0x1c8] sm:$0xff]
      %v248 = vld [vmem:[%s1 + $0x1d0] sm:$0xff]
      %v249 = vld [vmem:[%s1 + $0x1d8] sm:$0xff]
      %v250 = vld [vmem:[%s1 + $0x1e0] sm:$0xff]
      %v251 = vld [vmem:[%s1 + $0x1e8] sm:$0xff]
      %v252 = vld [vmem:[%s1 + $0x1f0] sm:$0xff]
      %v253 = vld [vmem:[%s1 + $0x1f8] sm:$0xff]
      %v254 = vld [vmem:[%s173] sm:$0xff]
      %v255 = vld [vmem:[%s173 + $0x8] sm:$0xff]
      %v256 = vld [vmem:[%s173 + $0x10] sm:$0xff]
      %v257 = vld [vmem:[%s173 + $0x18] sm:$0xff]
      %v258 = vld [vmem:[#allocation2] sm:$0xff]
      %259 = vmatprep.subr.mxu0 %v251
      %260 = vmatpush1.msra.mxu0 %v250
      %261 = vmatprep.subr.mxu0 %v247
      %262 = vmatpush1.msra.mxu0 %v246
      %263 = vmatprep.subr.mxu0 %v243
      %264 = vmatpush1.msra.mxu0 %v242
      %265 = vmatprep.subr.mxu0 %v239
      %266 = vmatpush1.msra.mxu0 %v238
      %267 = vmatprep.subr.mxu0 %v235
      %268 = vmatpush1.msra.mxu0 %v234
      %269 = vmatprep.subr.mxu0 %v231
      %270 = vmatpush1.msra.mxu0 %v230
      %271 = vmatprep.subr.mxu0 %v227
      %272 = vmatpush1.msra.mxu0 %v226
      %273 = vmatprep.subr.mxu0 %v223
      %274 = vmatpush1.msra.mxu0 %v222
      %275 = vmatprep.subr.mxu0 %v219
      %276 = vmatpush1.msra.mxu0 %v218
      %277 = vmatprep.subr.mxu0 %v215
      %278 = vmatpush1.msra.mxu0 %v214
      %279 = vmatprep.subr.mxu0 %v211
      %280 = vmatpush1.msra.mxu0 %v210
      %281 = vmatprep.subr.mxu0 %v207
      %282 = vmatpush1.msra.mxu0 %v206
      %283 = vmatprep.subr.mxu0 %v203
      %284 = vmatpush1.msra.mxu0 %v202
      %285 = vmatprep.subr.mxu0 %v199
      %286 = vmatpush1.msra.mxu0 %v198
      %287 = vmatprep.subr.mxu0 %v195
      %288 = vmatpush1.msra.mxu0 %v194
      %289 = vmatprep.subr.mxu0 %v191
      %290 = vmatpush1.msra.mxu0 %v190
      %291 = vmatprep.subr.mxu0 0.0
      %292 = vmatpush2.msra.mxu0 0.0
      %293 = vmatprep.subr.mxu0 0.0
      %294 = vmatpush2.msra.mxu0 0.0
      %295 = vmatprep.subr.mxu0 0.0
      %296 = vmatpush2.msra.mxu0 0.0
      %297 = vmatprep.subr.mxu0 0.0
      %298 = vmatpush2.msra.mxu0 0.0
      %299 = vmatprep.subr.mxu0 0.0
      %300 = vmatpush2.msra.mxu0 0.0
      %301 = vmatprep.subr.mxu0 0.0
      %302 = vmatpush2.msra.mxu0 0.0
      %303 = vmatprep.subr.mxu0 0.0
      %304 = vmatpush2.msra.mxu0 0.0
      %305 = vmatprep.subr.mxu0 0.0
      %306 = vmatpush2.msra.mxu0 0.0
      %307 = vmatprep.subr.mxu0 0.0
      %308 = vmatpush2.msra.mxu0 0.0
      %309 = vmatprep.subr.mxu0 0.0
      %310 = vmatpush2.msra.mxu0 0.0
      %311 = vmatprep.subr.mxu0 0.0
      %312 = vmatpush2.msra.mxu0 0.0
      %313 = vmatprep.subr.mxu0 0.0
      %314 = vmatpush2.msra.mxu0 0.0
      %315 = vmatprep.subr.mxu0 0.0
      %316 = vmatpush2.msra.mxu0 0.0
      %317 = vmatprep.subr.mxu0 0.0
      %318 = vmatpush2.msra.mxu0 0.0
      %319 = vmatprep.subr.mxu0 0.0
      %320 = vmatpush2.msra.mxu0 0.0
      %321 = vmatprep.subr.mxu0 0.0
      %322 = vmatpush2.msra.mxu0 0.0
      %323 = vmatprep.mubr.f32.mxu0 0.0
      %324 = vmatmul.mubr.f32.gmra.mxu0 %v258
      %v325 = vpop.f32.mrf.mxu0
      %v326 = vadd.f32 0.0, %v325
      %v327 = vpop.f32.mrf.mxu0
      %v328 = vadd.f32 0.0, %v327
      %329 = vdwg.mxu0
      %330 = vmatprep.subr.mxu0 %v253
      %331 = vmatpush1.msra.mxu0 %v252
      %332 = vmatprep.subr.mxu0 %v249
      %333 = vmatpush1.msra.mxu0 %v248
      %334 = vmatprep.subr.mxu0 %v245
      %335 = vmatpush1.msra.mxu0 %v244
      %336 = vmatprep.subr.mxu0 %v241
      %337 = vmatpush1.msra.mxu0 %v240
      %338 = vmatprep.subr.mxu0 %v237
      %339 = vmatpush1.msra.mxu0 %v236
      %340 = vmatprep.subr.mxu0 %v233
      %341 = vmatpush1.msra.mxu0 %v232
      %342 = vmatprep.subr.mxu0 %v229
      %343 = vmatpush1.msra.mxu0 %v228
      %344 = vmatprep.subr.mxu0 %v225
      %345 = vmatpush1.msra.mxu0 %v224
      %346 = vmatprep.subr.mxu0 %v221
      %347 = vmatpush1.msra.mxu0 %v220
      %348 = vmatprep.subr.mxu0 %v217
      %349 = vmatpush1.msra.mxu0 %v216
      %350 = vmatprep.subr.mxu0 %v213
      %351 = vmatpush1.msra.mxu0 %v212
      %352 = vmatprep.subr.mxu0 %v209
      %353 = vmatpush1.msra.mxu0 %v208
      %354 = vmatprep.subr.mxu0 %v205
      %355 = vmatpush1.msra.mxu0 %v204
      %356 = vmatprep.subr.mxu0 %v201
      %357 = vmatpush1.msra.mxu0 %v200
      %358 = vmatprep.subr.mxu0 %v197
      %359 = vmatpush1.msra.mxu0 %v196
      %360 = vmatprep.subr.mxu0 %v193
      %361 = vmatpush1.msra.mxu0 %v192
      %362 = vmatprep.subr.mxu0 0.0
      %363 = vmatpush2.msra.mxu0 0.0
      %364 = vmatprep.subr.mxu0 0.0
      %365 = vmatpush2.msra.mxu0 0.0
      %366 = vmatprep.subr.mxu0 0.0
      %367 = vmatpush2.msra.mxu0 0.0
      %368 = vmatprep.subr.mxu0 0.0
      %369 = vmatpush2.msra.mxu0 0.0
      %370 = vmatprep.subr.mxu0 0.0
      %371 = vmatpush2.msra.mxu0 0.0
      %372 = vmatprep.subr.mxu0 0.0
      %373 = vmatpush2.msra.mxu0 0.0
      %374 = vmatprep.subr.mxu0 0.0
      %375 = vmatpush2.msra.mxu0 0.0
      %376 = vmatprep.subr.mxu0 0.0
      %377 = vmatpush2.msra.mxu0 0.0
      %378 = vmatprep.subr.mxu0 0.0
      %379 = vmatpush2.msra.mxu0 0.0
      %380 = vmatprep.subr.mxu0 0.0
      %381 = vmatpush2.msra.mxu0 0.0
      %382 = vmatprep.subr.mxu0 0.0
      %383 = vmatpush2.msra.mxu0 0.0
      %384 = vmatprep.subr.mxu0 0.0
      %385 = vmatpush2.msra.mxu0 0.0
      %386 = vmatprep.subr.mxu0 0.0
      %387 = vmatpush2.msra.mxu0 0.0
      %388 = vmatprep.subr.mxu0 0.0
      %389 = vmatpush2.msra.mxu0 0.0
      %390 = vmatprep.subr.mxu0 0.0
      %391 = vmatpush2.msra.mxu0 0.0
      %392 = vmatprep.subr.mxu0 0.0
      %393 = vmatpush2.msra.mxu0 0.0
      %394 = vmatprep.mubr.f32.mxu0 0.0
      %395 = vmatmul.mubr.f32.gmra.mxu0 %v258
      %v396 = vpop.f32.mrf.mxu0
      %v397 = vadd.f32 0.0, %v396
      %v398 = vpop.f32.mrf.mxu0
      %v399 = vadd.f32 0.0, %v398
      %400 = vdwg.mxu0
      %v401 = vadd.f32 %v254, %v326
      %v402 = vadd.f32 %v255, %v328
      %v403 = vadd.f32 %v256, %v397
      %v404 = vadd.f32 %v257, %v399
      %v405 = vxor.u32 %v401, 2147483648
      %v406 = vxor.u32 %v402, 2147483648
      %v407 = vxor.u32 %v403, 2147483648
      %v408 = vmul.f32 %v405, 1.442695
      %v409 = vpow.pop %v408
      %v410 = vmul.f32 %v406, 1.442695
      %v411 = vpow.pop %v410
      %v412 = vmul.f32 %v407, 1.442695
      %v413 = vpow.pop %v412
      %v414 = vadd.f32 %v409, 1.0
      %v415 = vadd.f32 %v411, 1.0
      %v416 = vadd.f32 %v413, 1.0
      %v417 = vrcp.pop %v414
      %v418 = vmul.f32 1.0, %v417
      %v419 = vrcp.pop %v415
      %v420 = vmul.f32 1.0, %v419
      %v421 = vrcp.pop %v416
      %v422 = vmul.f32 1.0, %v421
      %v423 = vtanh.pop %v404
      %v424 = vld [vmem:[#allocation3] sm:$0xff]
      %v425 = vmul.f32 %v420, %v424
      %v426 = vmul.f32 %v418, %v423
      %v427 = vadd.f32 %v425, %v426
      %v428 = vtanh.pop %v427
      %v429 = vmul.f32 %v422, %v428
      %430 = vst [vmem:[#allocation3] sm:$0xff] %v427
      %431 = vst [vmem:[#allocation2] sm:$0xff] %v429
      %432 = vst [vmem:[%s182] sm:$0xff] %v429
      %s433 = scalar_lea.vmem %s173, 32
      %v434 = vld [vmem:[%s433] sm:$0xff]
      %v435 = vld [vmem:[%s433 + $0x8] sm:$0xff]
      %v436 = vld [vmem:[%s433 + $0x10] sm:$0xff]
      %v437 = vld [vmem:[%s433 + $0x18] sm:$0xff]
      %v438 = vld [vmem:[#allocation2] sm:$0xff]
      %439 = vmatprep.subr.mxu0 %v251
      %440 = vmatpush1.msra.mxu0 %v250
      %441 = vmatprep.subr.mxu0 %v247
      %442 = vmatpush1.msra.mxu0 %v246
      %443 = vmatprep.subr.mxu0 %v243
      %444 = vmatpush1.msra.mxu0 %v242
      %445 = vmatprep.subr.mxu0 %v239
      %446 = vmatpush1.msra.mxu0 %v238
      %447 = vmatprep.subr.mxu0 %v235
      %448 = vmatpush1.msra.mxu0 %v234
      %449 = vmatprep.subr.mxu0 %v231
      %450 = vmatpush1.msra.mxu0 %v230
      %451 = vmatprep.subr.mxu0 %v227
      %452 = vmatpush1.msra.mxu0 %v226
      %453 = vmatprep.subr.mxu0 %v223
      %454 = vmatpush1.msra.mxu0 %v222
      %455 = vmatprep.subr.mxu0 %v219
      %456 = vmatpush1.msra.mxu0 %v218
      %457 = vmatprep.subr.mxu0 %v215
      %458 = vmatpush1.msra.mxu0 %v214
      %459 = vmatprep.subr.mxu0 %v211
      %460 = vmatpush1.msra.mxu0 %v210
      %461 = vmatprep.subr.mxu0 %v207
      %462 = vmatpush1.msra.mxu0 %v206
      %463 = vmatprep.subr.mxu0 %v203
      %464 = vmatpush1.msra.mxu0 %v202
      %465 = vmatprep.subr.mxu0 %v199
      %466 = vmatpush1.msra.mxu0 %v198
      %467 = vmatprep.subr.mxu0 %v195
      %468 = vmatpush1.msra.mxu0 %v194
      %469 = vmatprep.subr.mxu0 %v191
      %470 = vmatpush1.msra.mxu0 %v190
      %471 = vmatprep.subr.mxu0 0.0
      %472 = vmatpush2.msra.mxu0 0.0
      %473 = vmatprep.subr.mxu0 0.0
      %474 = vmatpush2.msra.mxu0 0.0
      %475 = vmatprep.subr.mxu0 0.0
      %476 = vmatpush2.msra.mxu0 0.0
      %477 = vmatprep.subr.mxu0 0.0
      %478 = vmatpush2.msra.mxu0 0.0
      %479 = vmatprep.subr.mxu0 0.0
      %480 = vmatpush2.msra.mxu0 0.0
      %481 = vmatprep.subr.mxu0 0.0
      %482 = vmatpush2.msra.mxu0 0.0
      %483 = vmatprep.subr.mxu0 0.0
      %484 = vmatpush2.msra.mxu0 0.0
      %485 = vmatprep.subr.mxu0 0.0
      %486 = vmatpush2.msra.mxu0 0.0
      %487 = vmatprep.subr.mxu0 0.0
      %488 = vmatpush2.msra.mxu0 0.0
      %489 = vmatprep.subr.mxu0 0.0
      %490 = vmatpush2.msra.mxu0 0.0
      %491 = vmatprep.subr.mxu0 0.0
      %492 = vmatpush2.msra.mxu0 0.0
      %493 = vmatprep.subr.mxu0 0.0
      %494 = vmatpush2.msra.mxu0 0.0
      %495 = vmatprep.subr.mxu0 0.0
      %496 = vmatpush2.msra.mxu0 0.0
      %497 = vmatprep.subr.mxu0 0.0
      %498 = vmatpush2.msra.mxu0 0.0
      %499 = vmatprep.subr.mxu0 0.0
      %500 = vmatpush2.msra.mxu0 0.0
      %501 = vmatprep.subr.mxu0 0.0
      %502 = vmatpush2.msra.mxu0 0.0
      %503 = vmatprep.mubr.f32.mxu0 0.0
      %504 = vmatmul.mubr.f32.gmra.mxu0 %v438
      %v505 = vpop.f32.mrf.mxu0
      %v506 = vadd.f32 0.0, %v505
      %v507 = vpop.f32.mrf.mxu0
      %v508 = vadd.f32 0.0, %v507
      %509 = vdwg.mxu0
      %510 = vmatprep.subr.mxu0 %v253
      %511 = vmatpush1.msra.mxu0 %v252
      %512 = vmatprep.subr.mxu0 %v249
      %513 = vmatpush1.msra.mxu0 %v248
      %514 = vmatprep.subr.mxu0 %v245
      %515 = vmatpush1.msra.mxu0 %v244
      %516 = vmatprep.subr.mxu0 %v241
      %517 = vmatpush1.msra.mxu0 %v240
      %518 = vmatprep.subr.mxu0 %v237
      %519 = vmatpush1.msra.mxu0 %v236
      %520 = vmatprep.subr.mxu0 %v233
      %521 = vmatpush1.msra.mxu0 %v232
      %522 = vmatprep.subr.mxu0 %v229
      %523 = vmatpush1.msra.mxu0 %v228
      %524 = vmatprep.subr.mxu0 %v225
      %525 = vmatpush1.msra.mxu0 %v224
      %526 = vmatprep.subr.mxu0 %v221
      %527 = vmatpush1.msra.mxu0 %v220
      %528 = vmatprep.subr.mxu0 %v217
      %529 = vmatpush1.msra.mxu0 %v216
      %530 = vmatprep.subr.mxu0 %v213
      %531 = vmatpush1.msra.mxu0 %v212
      %532 = vmatprep.subr.mxu0 %v209
      %533 = vmatpush1.msra.mxu0 %v208
      %534 = vmatprep.subr.mxu0 %v205
      %535 = vmatpush1.msra.mxu0 %v204
      %536 = vmatprep.subr.mxu0 %v201
      %537 = vmatpush1.msra.mxu0 %v200
      %538 = vmatprep.subr.mxu0 %v197
      %539 = vmatpush1.msra.mxu0 %v196
      %540 = vmatprep.subr.mxu0 %v193
      %541 = vmatpush1.msra.mxu0 %v192
      %542 = vmatprep.subr.mxu0 0.0
      %543 = vmatpush2.msra.mxu0 0.0
      %544 = vmatprep.subr.mxu0 0.0
      %545 = vmatpush2.msra.mxu0 0.0
      %546 = vmatprep.subr.mxu0 0.0
      %547 = vmatpush2.msra.mxu0 0.0
      %548 = vmatprep.subr.mxu0 0.0
      %549 = vmatpush2.msra.mxu0 0.0
      %550 = vmatprep.subr.mxu0 0.0
      %551 = vmatpush2.msra.mxu0 0.0
      %552 = vmatprep.subr.mxu0 0.0
      %553 = vmatpush2.msra.mxu0 0.0
      %554 = vmatprep.subr.mxu0 0.0
      %555 = vmatpush2.msra.mxu0 0.0
      %556 = vmatprep.subr.mxu0 0.0
      %557 = vmatpush2.msra.mxu0 0.0
      %558 = vmatprep.subr.mxu0 0.0
      %559 = vmatpush2.msra.mxu0 0.0
      %560 = vmatprep.subr.mxu0 0.0
      %561 = vmatpush2.msra.mxu0 0.0
      %562 = vmatprep.subr.mxu0 0.0
      %563 = vmatpush2.msra.mxu0 0.0
      %564 = vmatprep.subr.mxu0 0.0
      %565 = vmatpush2.msra.mxu0 0.0
      %566 = vmatprep.subr.mxu0 0.0
      %567 = vmatpush2.msra.mxu0 0.0
      %568 = vmatprep.subr.mxu0 0.0
      %569 = vmatpush2.msra.mxu0 0.0
      %570 = vmatprep.subr.mxu0 0.0
      %571 = vmatpush2.msra.mxu0 0.0
      %572 = vmatprep.subr.mxu0 0.0
      %573 = vmatpush2.msra.mxu0 0.0
      %574 = vmatprep.mubr.f32.mxu0 0.0
      %575 = vmatmul.mubr.f32.gmra.mxu0 %v438
      %v576 = vpop.f32.mrf.mxu0
      %v577 = vadd.f32 0.0, %v576
      %v578 = vpop.f32.mrf.mxu0
      %v579 = vadd.f32 0.0, %v578
      %580 = vdwg.mxu0
      %v581 = vadd.f32 %v434, %v506
      %v582 = vadd.f32 %v435, %v508
      %v583 = vadd.f32 %v436, %v577
      %v584 = vadd.f32 %v437, %v579
      %v585 = vxor.u32 %v581, 2147483648
      %v586 = vxor.u32 %v582, 2147483648
      %v587 = vxor.u32 %v583, 2147483648
      %v588 = vmul.f32 %v585, 1.442695
      %v589 = vpow.pop %v588
      %v590 = vmul.f32 %v586, 1.442695
      %v591 = vpow.pop %v590
      %v592 = vmul.f32 %v587, 1.442695
      %v593 = vpow.pop %v592
      %v594 = vadd.f32 %v589, 1.0
      %v595 = vadd.f32 %v591, 1.0
      %v596 = vadd.f32 %v593, 1.0
      %v597 = vrcp.pop %v594
      %v598 = vmul.f32 1.0, %v597
      %v599 = vrcp.pop %v595
      %v600 = vmul.f32 1.0, %v599
      %v601 = vrcp.pop %v596
      %v602 = vmul.f32 1.0, %v601
      %v603 = vtanh.pop %v584
      %v604 = vld [vmem:[#allocation3] sm:$0xff]
      %v605 = vmul.f32 %v600, %v604
      %v606 = vmul.f32 %v598, %v603
      %v607 = vadd.f32 %v605, %v606
      %v608 = vtanh.pop %v607
      %v609 = vmul.f32 %v602, %v608
      %610 = vst [vmem:[#allocation3] sm:$0xff] %v607
      %611 = vst [vmem:[#allocation2] sm:$0xff] %v609
      %s612 = scalar_lea.vmem %s182, 8
      %613 = vst [vmem:[%s612] sm:$0xff] %v609
      %s614 = scalar_lea.vmem %s173, 64
      %v615 = vld [vmem:[%s614] sm:$0xff]
      %v616 = vld [vmem:[%s614 + $0x8] sm:$0xff]
      %v617 = vld [vmem:[%s614 + $0x10] sm:$0xff]
      %v618 = vld [vmem:[%s614 + $0x18] sm:$0xff]
      %v619 = vld [vmem:[#allocation2] sm:$0xff]
      %620 = vmatprep.subr.mxu0 %v251
      %621 = vmatpush1.msra.mxu0 %v250
      %622 = vmatprep.subr.mxu0 %v247
      %623 = vmatpush1.msra.mxu0 %v246
      %624 = vmatprep.subr.mxu0 %v243
      %625 = vmatpush1.msra.mxu0 %v242
      %626 = vmatprep.subr.mxu0 %v239
      %627 = vmatpush1.msra.mxu0 %v238
      %628 = vmatprep.subr.mxu0 %v235
      %629 = vmatpush1.msra.mxu0 %v234
      %630 = vmatprep.subr.mxu0 %v231
      %631 = vmatpush1.msra.mxu0 %v230
      %632 = vmatprep.subr.mxu0 %v227
      %633 = vmatpush1.msra.mxu0 %v226
      %634 = vmatprep.subr.mxu0 %v223
      %635 = vmatpush1.msra.mxu0 %v222
      %636 = vmatprep.subr.mxu0 %v219
      %637 = vmatpush1.msra.mxu0 %v218
      %638 = vmatprep.subr.mxu0 %v215
      %639 = vmatpush1.msra.mxu0 %v214
      %640 = vmatprep.subr.mxu0 %v211
      %641 = vmatpush1.msra.mxu0 %v210
      %642 = vmatprep.subr.mxu0 %v207
      %643 = vmatpush1.msra.mxu0 %v206
      %644 = vmatprep.subr.mxu0 %v203
      %645 = vmatpush1.msra.mxu0 %v202
      %646 = vmatprep.subr.mxu0 %v199
      %647 = vmatpush1.msra.mxu0 %v198
      %648 = vmatprep.subr.mxu0 %v195
      %649 = vmatpush1.msra.mxu0 %v194
      %650 = vmatprep.subr.mxu0 %v191
      %651 = vmatpush1.msra.mxu0 %v190
      %652 = vmatprep.subr.mxu0 0.0
      %653 = vmatpush2.msra.mxu0 0.0
      %654 = vmatprep.subr.mxu0 0.0
      %655 = vmatpush2.msra.mxu0 0.0
      %656 = vmatprep.subr.mxu0 0.0
      %657 = vmatpush2.msra.mxu0 0.0
      %658 = vmatprep.subr.mxu0 0.0
      %659 = vmatpush2.msra.mxu0 0.0
      %660 = vmatprep.subr.mxu0 0.0
      %661 = vmatpush2.msra.mxu0 0.0
      %662 = vmatprep.subr.mxu0 0.0
      %663 = vmatpush2.msra.mxu0 0.0
      %664 = vmatprep.subr.mxu0 0.0
      %665 = vmatpush2.msra.mxu0 0.0
      %666 = vmatprep.subr.mxu0 0.0
      %667 = vmatpush2.msra.mxu0 0.0
      %668 = vmatprep.subr.mxu0 0.0
      %669 = vmatpush2.msra.mxu0 0.0
      %670 = vmatprep.subr.mxu0 0.0
      %671 = vmatpush2.msra.mxu0 0.0
      %672 = vmatprep.subr.mxu0 0.0
      %673 = vmatpush2.msra.mxu0 0.0
      %674 = vmatprep.subr.mxu0 0.0
      %675 = vmatpush2.msra.mxu0 0.0
      %676 = vmatprep.subr.mxu0 0.0
      %677 = vmatpush2.msra.mxu0 0.0
      %678 = vmatprep.subr.mxu0 0.0
      %679 = vmatpush2.msra.mxu0 0.0
      %680 = vmatprep.subr.mxu0 0.0
      %681 = vmatpush2.msra.mxu0 0.0
      %682 = vmatprep.subr.mxu0 0.0
      %683 = vmatpush2.msra.mxu0 0.0
      %684 = vmatprep.mubr.f32.mxu0 0.0
      %685 = vmatmul.mubr.f32.gmra.mxu0 %v619
      %v686 = vpop.f32.mrf.mxu0
      %v687 = vadd.f32 0.0, %v686
      %v688 = vpop.f32.mrf.mxu0
      %v689 = vadd.f32 0.0, %v688
      %690 = vdwg.mxu0
      %691 = vmatprep.subr.mxu0 %v253
      %692 = vmatpush1.msra.mxu0 %v252
      %693 = vmatprep.subr.mxu0 %v249
      %694 = vmatpush1.msra.mxu0 %v248
      %695 = vmatprep.subr.mxu0 %v245
      %696 = vmatpush1.msra.mxu0 %v244
      %697 = vmatprep.subr.mxu0 %v241
      %698 = vmatpush1.msra.mxu0 %v240
      %699 = vmatprep.subr.mxu0 %v237
      %700 = vmatpush1.msra.mxu0 %v236
      %701 = vmatprep.subr.mxu0 %v233
      %702 = vmatpush1.msra.mxu0 %v232
      %703 = vmatprep.subr.mxu0 %v229
      %704 = vmatpush1.msra.mxu0 %v228
      %705 = vmatprep.subr.mxu0 %v225
      %706 = vmatpush1.msra.mxu0 %v224
      %707 = vmatprep.subr.mxu0 %v221
      %708 = vmatpush1.msra.mxu0 %v220
      %709 = vmatprep.subr.mxu0 %v217
      %710 = vmatpush1.msra.mxu0 %v216
      %711 = vmatprep.subr.mxu0 %v213
      %712 = vmatpush1.msra.mxu0 %v212
      %713 = vmatprep.subr.mxu0 %v209
      %714 = vmatpush1.msra.mxu0 %v208
      %715 = vmatprep.subr.mxu0 %v205
      %716 = vmatpush1.msra.mxu0 %v204
      %717 = vmatprep.subr.mxu0 %v201
      %718 = vmatpush1.msra.mxu0 %v200
      %719 = vmatprep.subr.mxu0 %v197
      %720 = vmatpush1.msra.mxu0 %v196
      %721 = vmatprep.subr.mxu0 %v193
      %722 = vmatpush1.msra.mxu0 %v192
      %723 = vmatprep.subr.mxu0 0.0
      %724 = vmatpush2.msra.mxu0 0.0
      %725 = vmatprep.subr.mxu0 0.0
      %726 = vmatpush2.msra.mxu0 0.0
      %727 = vmatprep.subr.mxu0 0.0
      %728 = vmatpush2.msra.mxu0 0.0
      %729 = vmatprep.subr.mxu0 0.0
      %730 = vmatpush2.msra.mxu0 0.0
      %731 = vmatprep.subr.mxu0 0.0
      %732 = vmatpush2.msra.mxu0 0.0
      %733 = vmatprep.subr.mxu0 0.0
      %734 = vmatpush2.msra.mxu0 0.0
      %735 = vmatprep.subr.mxu0 0.0
      %736 = vmatpush2.msra.mxu0 0.0
      %737 = vmatprep.subr.mxu0 0.0
      %738 = vmatpush2.msra.mxu0 0.0
      %739 = vmatprep.subr.mxu0 0.0
      %740 = vmatpush2.msra.mxu0 0.0
      %741 = vmatprep.subr.mxu0 0.0
      %742 = vmatpush2.msra.mxu0 0.0
      %743 = vmatprep.subr.mxu0 0.0
      %744 = vmatpush2.msra.mxu0 0.0
      %745 = vmatprep.subr.mxu0 0.0
      %746 = vmatpush2.msra.mxu0 0.0
      %747 = vmatprep.subr.mxu0 0.0
      %748 = vmatpush2.msra.mxu0 0.0
      %749 = vmatprep.subr.mxu0 0.0
      %750 = vmatpush2.msra.mxu0 0.0
      %751 = vmatprep.subr.mxu0 0.0
      %752 = vmatpush2.msra.mxu0 0.0
      %753 = vmatprep.subr.mxu0 0.0
      %754 = vmatpush2.msra.mxu0 0.0
      %755 = vmatprep.mubr.f32.mxu0 0.0
      %756 = vmatmul.mubr.f32.gmra.mxu0 %v619
      %v757 = vpop.f32.mrf.mxu0
      %v758 = vadd.f32 0.0, %v757
      %v759 = vpop.f32.mrf.mxu0
      %v760 = vadd.f32 0.0, %v759
      %761 = vdwg.mxu0
      %v762 = vadd.f32 %v615, %v687
      %v763 = vadd.f32 %v616, %v689
      %v764 = vadd.f32 %v617, %v758
      %v765 = vadd.f32 %v618, %v760
      %v766 = vxor.u32 %v762, 2147483648
      %v767 = vxor.u32 %v763, 2147483648
      %v768 = vxor.u32 %v764, 2147483648
      %v769 = vmul.f32 %v766, 1.442695
      %v770 = vpow.pop %v769
      %v771 = vmul.f32 %v767, 1.442695
      %v772 = vpow.pop %v771
      %v773 = vmul.f32 %v768, 1.442695
      %v774 = vpow.pop %v773
      %v775 = vadd.f32 %v770, 1.0
      %v776 = vadd.f32 %v772, 1.0
      %v777 = vadd.f32 %v774, 1.0
      %v778 = vrcp.pop %v775
      %v779 = vmul.f32 1.0, %v778
      %v780 = vrcp.pop %v776
      %v781 = vmul.f32 1.0, %v780
      %v782 = vrcp.pop %v777
      %v783 = vmul.f32 1.0, %v782
      %v784 = vtanh.pop %v765
      %v785 = vld [vmem:[#allocation3] sm:$0xff]
      %v786 = vmul.f32 %v781, %v785
      %v787 = vmul.f32 %v779, %v784
      %v788 = vadd.f32 %v786, %v787
      %v789 = vtanh.pop %v788
      %v790 = vmul.f32 %v783, %v789
      %791 = vst [vmem:[#allocation3] sm:$0xff] %v788
      %792 = vst [vmem:[#allocation2] sm:$0xff] %v790
      %s793 = scalar_lea.vmem %s182, 16
      %794 = vst [vmem:[%s793] sm:$0xff] %v790
      %s795 = scalar_lea.vmem %s173, 96
      %v796 = vld [vmem:[%s795] sm:$0xff]
      %v797 = vld [vmem:[%s795 + $0x8] sm:$0xff]
      %v798 = vld [vmem:[%s795 + $0x10] sm:$0xff]
      %v799 = vld [vmem:[%s795 + $0x18] sm:$0xff]
      %v800 = vld [vmem:[#allocation2] sm:$0xff]
      %801 = vmatprep.subr.mxu0 %v251
      %802 = vmatpush1.msra.mxu0 %v250
      %803 = vmatprep.subr.mxu0 %v247
      %804 = vmatpush1.msra.mxu0 %v246
      %805 = vmatprep.subr.mxu0 %v243
      %806 = vmatpush1.msra.mxu0 %v242
      %807 = vmatprep.subr.mxu0 %v239
      %808 = vmatpush1.msra.mxu0 %v238
      %809 = vmatprep.subr.mxu0 %v235
      %810 = vmatpush1.msra.mxu0 %v234
      %811 = vmatprep.subr.mxu0 %v231
      %812 = vmatpush1.msra.mxu0 %v230
      %813 = vmatprep.subr.mxu0 %v227
      %814 = vmatpush1.msra.mxu0 %v226
      %815 = vmatprep.subr.mxu0 %v223
      %816 = vmatpush1.msra.mxu0 %v222
      %817 = vmatprep.subr.mxu0 %v219
      %818 = vmatpush1.msra.mxu0 %v218
      %819 = vmatprep.subr.mxu0 %v215
      %820 = vmatpush1.msra.mxu0 %v214
      %821 = vmatprep.subr.mxu0 %v211
      %822 = vmatpush1.msra.mxu0 %v210
      %823 = vmatprep.subr.mxu0 %v207
      %824 = vmatpush1.msra.mxu0 %v206
      %825 = vmatprep.subr.mxu0 %v203
      %826 = vmatpush1.msra.mxu0 %v202
      %827 = vmatprep.subr.mxu0 %v199
      %828 = vmatpush1.msra.mxu0 %v198
      %829 = vmatprep.subr.mxu0 %v195
      %830 = vmatpush1.msra.mxu0 %v194
      %831 = vmatprep.subr.mxu0 %v191
      %832 = vmatpush1.msra.mxu0 %v190
      %833 = vmatprep.subr.mxu0 0.0
      %834 = vmatpush2.msra.mxu0 0.0
      %835 = vmatprep.subr.mxu0 0.0
      %836 = vmatpush2.msra.mxu0 0.0
      %837 = vmatprep.subr.mxu0 0.0
      %838 = vmatpush2.msra.mxu0 0.0
      %839 = vmatprep.subr.mxu0 0.0
      %840 = vmatpush2.msra.mxu0 0.0
      %841 = vmatprep.subr.mxu0 0.0
      %842 = vmatpush2.msra.mxu0 0.0
      %843 = vmatprep.subr.mxu0 0.0
      %844 = vmatpush2.msra.mxu0 0.0
      %845 = vmatprep.subr.mxu0 0.0
      %846 = vmatpush2.msra.mxu0 0.0
      %847 = vmatprep.subr.mxu0 0.0
      %848 = vmatpush2.msra.mxu0 0.0
      %849 = vmatprep.subr.mxu0 0.0
      %850 = vmatpush2.msra.mxu0 0.0
      %851 = vmatprep.subr.mxu0 0.0
      %852 = vmatpush2.msra.mxu0 0.0
      %853 = vmatprep.subr.mxu0 0.0
      %854 = vmatpush2.msra.mxu0 0.0
      %855 = vmatprep.subr.mxu0 0.0
      %856 = vmatpush2.msra.mxu0 0.0
      %857 = vmatprep.subr.mxu0 0.0
      %858 = vmatpush2.msra.mxu0 0.0
      %859 = vmatprep.subr.mxu0 0.0
      %860 = vmatpush2.msra.mxu0 0.0
      %861 = vmatprep.subr.mxu0 0.0
      %862 = vmatpush2.msra.mxu0 0.0
      %863 = vmatprep.subr.mxu0 0.0
      %864 = vmatpush2.msra.mxu0 0.0
      %865 = vmatprep.mubr.f32.mxu0 0.0
      %866 = vmatmul.mubr.f32.gmra.mxu0 %v800
      %v867 = vpop.f32.mrf.mxu0
      %v868 = vadd.f32 0.0, %v867
      %v869 = vpop.f32.mrf.mxu0
      %v870 = vadd.f32 0.0, %v869
      %871 = vdwg.mxu0
      %872 = vmatprep.subr.mxu0 %v253
      %873 = vmatpush1.msra.mxu0 %v252
      %874 = vmatprep.subr.mxu0 %v249
      %875 = vmatpush1.msra.mxu0 %v248
      %876 = vmatprep.subr.mxu0 %v245
      %877 = vmatpush1.msra.mxu0 %v244
      %878 = vmatprep.subr.mxu0 %v241
      %879 = vmatpush1.msra.mxu0 %v240
      %880 = vmatprep.subr.mxu0 %v237
      %881 = vmatpush1.msra.mxu0 %v236
      %882 = vmatprep.subr.mxu0 %v233
      %883 = vmatpush1.msra.mxu0 %v232
      %884 = vmatprep.subr.mxu0 %v229
      %885 = vmatpush1.msra.mxu0 %v228
      %886 = vmatprep.subr.mxu0 %v225
      %887 = vmatpush1.msra.mxu0 %v224
      %888 = vmatprep.subr.mxu0 %v221
      %889 = vmatpush1.msra.mxu0 %v220
      %890 = vmatprep.subr.mxu0 %v217
      %891 = vmatpush1.msra.mxu0 %v216
      %892 = vmatprep.subr.mxu0 %v213
      %893 = vmatpush1.msra.mxu0 %v212
      %894 = vmatprep.subr.mxu0 %v209
      %895 = vmatpush1.msra.mxu0 %v208
      %896 = vmatprep.subr.mxu0 %v205
      %897 = vmatpush1.msra.mxu0 %v204
      %898 = vmatprep.subr.mxu0 %v201
      %899 = vmatpush1.msra.mxu0 %v200
      %900 = vmatprep.subr.mxu0 %v197
      %901 = vmatpush1.msra.mxu0 %v196
      %902 = vmatprep.subr.mxu0 %v193
      %903 = vmatpush1.msra.mxu0 %v192
      %904 = vmatprep.subr.mxu0 0.0
      %905 = vmatpush2.msra.mxu0 0.0
      %906 = vmatprep.subr.mxu0 0.0
      %907 = vmatpush2.msra.mxu0 0.0
      %908 = vmatprep.subr.mxu0 0.0
      %909 = vmatpush2.msra.mxu0 0.0
      %910 = vmatprep.subr.mxu0 0.0
      %911 = vmatpush2.msra.mxu0 0.0
      %912 = vmatprep.subr.mxu0 0.0
      %913 = vmatpush2.msra.mxu0 0.0
      %914 = vmatprep.subr.mxu0 0.0
      %915 = vmatpush2.msra.mxu0 0.0
      %916 = vmatprep.subr.mxu0 0.0
      %917 = vmatpush2.msra.mxu0 0.0
      %918 = vmatprep.subr.mxu0 0.0
      %919 = vmatpush2.msra.mxu0 0.0
      %920 = vmatprep.subr.mxu0 0.0
      %921 = vmatpush2.msra.mxu0 0.0
      %922 = vmatprep.subr.mxu0 0.0
      %923 = vmatpush2.msra.mxu0 0.0
      %924 = vmatprep.subr.mxu0 0.0
      %925 = vmatpush2.msra.mxu0 0.0
      %926 = vmatprep.subr.mxu0 0.0
      %927 = vmatpush2.msra.mxu0 0.0
      %928 = vmatprep.subr.mxu0 0.0
      %929 = vmatpush2.msra.mxu0 0.0
      %930 = vmatprep.subr.mxu0 0.0
      %931 = vmatpush2.msra.mxu0 0.0
      %932 = vmatprep.subr.mxu0 0.0
      %933 = vmatpush2.msra.mxu0 0.0
      %934 = vmatprep.subr.mxu0 0.0
      %935 = vmatpush2.msra.mxu0 0.0
      %936 = vmatprep.mubr.f32.mxu0 0.0
      %937 = vmatmul.mubr.f32.gmra.mxu0 %v800
      %v938 = vpop.f32.mrf.mxu0
      %v939 = vadd.f32 0.0, %v938
      %v940 = vpop.f32.mrf.mxu0
      %v941 = vadd.f32 0.0, %v940
      %942 = vdwg.mxu0
      %v943 = vadd.f32 %v796, %v868
      %v944 = vadd.f32 %v797, %v870
      %v945 = vadd.f32 %v798, %v939
      %v946 = vadd.f32 %v799, %v941
      %v947 = vxor.u32 %v943, 2147483648
      %v948 = vxor.u32 %v944, 2147483648
      %v949 = vxor.u32 %v945, 2147483648
      %v950 = vmul.f32 %v947, 1.442695
      %v951 = vpow.pop %v950
      %v952 = vmul.f32 %v948, 1.442695
      %v953 = vpow.pop %v952
      %v954 = vmul.f32 %v949, 1.442695
      %v955 = vpow.pop %v954
      %v956 = vadd.f32 %v951, 1.0
      %v957 = vadd.f32 %v953, 1.0
      %v958 = vadd.f32 %v955, 1.0
      %v959 = vrcp.pop %v956
      %v960 = vmul.f32 1.0, %v959
      %v961 = vrcp.pop %v957
      %v962 = vmul.f32 1.0, %v961
      %v963 = vrcp.pop %v958
      %v964 = vmul.f32 1.0, %v963
      %v965 = vtanh.pop %v946
      %v966 = vld [vmem:[#allocation3] sm:$0xff]
      %v967 = vmul.f32 %v962, %v966
      %v968 = vmul.f32 %v960, %v965
      %v969 = vadd.f32 %v967, %v968
      %v970 = vtanh.pop %v969
      %v971 = vmul.f32 %v964, %v970
      %972 = vst [vmem:[#allocation3] sm:$0xff] %v969
      %973 = vst [vmem:[#allocation2] sm:$0xff] %v971
      %s974 = scalar_lea.vmem %s182, 24
      %975 = vst [vmem:[%s974] sm:$0xff] %v971
      %s976 = smul.u32 4, %s18
      %p977 = scmp.lt.s32.totalorder %s976, 7
      %s978 = scalar_select %p977, %s976, 7
      %p979 = scmp.lt.s32.totalorder %s17, 0
      %s980 = scalar_select %p979, %s17, 0
      %s981 = sadd.s32 %s980, %s978
      %s982 = smul.addr %s981, 8
      %s983 = scalar_lea.vmem %s2, %s982
      // Predicated region
      $region33: #{vanilla_lstm_forward.1} parent=27 // pred_check
        %p984 = pneg %p94
      $region34: #{vanilla_lstm_forward.1} parent=27 // pred_check_branch
        %986 = sbr.rel (%p984) target = $region36
      $region35: #{vanilla_lstm_forward.1} parent=27 // pred_region
        %s987 = smul.u32 4, %s18
      $region36: #{vanilla_lstm_forward.1} parent=27 // pred_fallthru
        _
    $region28: #{vanilla_lstm_forward.1} parent=5 // pred_fallthru
      _
    %p988 = scmp.le.s32.totalorder 2, %s8
    // Predicated region
    $region37: #{vanilla_lstm_forward.1} parent=5 // pred_check
      %p989 = pneg %p988
    $region38: #{vanilla_lstm_forward.1} parent=5 // pred_check_branch
      %991 = sbr.rel (%p989) target = $region40
    $region39: #{vanilla_lstm_forward.1} parent=5 // pred_region
      %s992 = ssub.s32 %s8, 2
      // Predicated region
      $region41: #{vanilla_lstm_forward.1} parent=39 // pred_check
        %p993 = pneg %p100
      $region42: #{vanilla_lstm_forward.1} parent=39 // pred_check_branch
        %995 = sbr.rel (%p993) target = $region44
      $region43: #{vanilla_lstm_forward.1} parent=39 // pred_region
        %s996 = smul.u32 4, %s20
        %p997 = scmp.lt.s32.totalorder %s996, 7
        %s998 = scalar_select %p997, %s996, 7
        %p999 = scmp.lt.s32.totalorder %s19, 0
        %s1000 = scalar_select %p999, %s19, 0
        %s1001 = sadd.s32 %s1000, %s998
        %s1002 = smul.addr %s1001, 8
        %s1003 = scalar_lea.vmem %s2, %s1002
      $region44: #{vanilla_lstm_forward.1} parent=39 // pred_fallthru
        _
    $region40: #{vanilla_lstm_forward.1} parent=5 // pred_fallthru
      _
  $region6: #{vanilla_lstm_forward.1} parent=0 // loop_footer
    %s12 = sadd.s32 1, %s8
  $region7: #{vanilla_lstm_forward.1} parent=0 // loop_footer_branch
    %7 = sbr.rel target = $region3
  $region8: #{vanilla_lstm_forward.1} parent=0 // loop_exit
    _

</llo_original>
